<compile_context>
chip_gen: v7x
topology: tpu7x:2x2x1
jax: 0.10.0
libtpu: 0.0.40
codegen_flags: <defaults>
</compile_context>

<pallas_src>
import functools

import jax
import jax.numpy as jnp
from jax.experimental import pallas as pl
from jax.experimental.pallas import tpu as pltpu

LANE = 128           # vreg lane width: keep feature dims lane-dense
MAX_BATCH_TILE = 256 # feeds v6e/v7x 256x256 MXU; fine on v5e too


def _round_up(x, m):
    return (x + m - 1) // m * m


def _choose_batch_tile(batch):
    """Adaptive M tile: no 128-padding waste at small B; >=2 grid steps when possible
    so dimension_semantics=("parallel",) can shard across v7x's two TensorCores."""
    tile = min(MAX_BATCH_TILE, _round_up(batch, 8))
    if _round_up(batch, tile) // tile == 1 and tile >= 16:
        tile = _round_up(tile // 2, 8)
    return tile


def prepare_generator_params(params, compute_dtype=jnp.bfloat16):
    """One-time prep (outside the hot path): zero-pad feature dims to 128 lanes and
    cast weights to the MXU compute dtype.  Biases stay f32 (added to f32 accumulator).
    Padded rows/cols are exactly zero, so results on the unpadded slice are unchanged.
    """
    prepared = []
    for w, b in params:
        ki = _round_up(w.shape[0], LANE)
        ko = _round_up(w.shape[1], LANE)
        wp = jnp.pad(w, ((0, ki - w.shape[0]), (0, ko - w.shape[1]))).astype(compute_dtype)
        bp = jnp.pad(b, ((0, 0), (0, ko - b.shape[1]))).astype(jnp.float32)
        prepared.append((wp, bp))
    return prepared


def _fused_generator_kernel(*refs, n_layers):
    """Fused forward: (Linear + LeakyReLU(0.2)) x (n-1), then Linear + Tanh.

    refs = (x_ref, w0_ref, b0_ref, w1_ref, b1_ref, ..., o_ref).
    Intermediate activations stay on-chip; only the final tile is written to HBM.
    """
    x_ref = refs[0]
    o_ref = refs[1 + 2 * n_layers]

    h = x_ref[...]
    for i in range(n_layers):
        w = refs[1 + 2 * i][...]
        b = refs[2 + 2 * i][...]                       # (1, out_pad) f32, broadcast add
        # bf16 MXU inputs, f32 accumulation.
        y = jnp.dot(h.astype(w.dtype), w, preferred_element_type=jnp.float32) + b
        if i == n_layers - 1:
            h = jnp.tanh(y)                            # EUP slot
        else:
            h = jnp.maximum(y, 0.2 * y)                # LeakyReLU(0.2): single vmax
            # Dropout(0.5) after non-last hidden layers is identity in eval mode.
    o_ref[...] = h.astype(o_ref.dtype)


def generator_forward(padded_params, x, *, out_features):
    """padded_params: output of prepare_generator_params; x: (B, in) -> (B, out_features)."""
    n_layers = len(padded_params)
    B = x.shape[0]
    in_pad = padded_params[0][0].shape[0]
    out_pad = padded_params[-1][0].shape[1]

    tile = _choose_batch_tile(B)
    b_pad = _round_up(B, tile)
    grid = (b_pad // tile,)

    # Only the (cheap) activation padding remains in the per-call path.
    x_p = jnp.pad(x, ((0, b_pad - B), (0, in_pad - x.shape[1])))

    in_specs = [pl.BlockSpec((tile, in_pad), lambda i: (i, 0))]
    flat_wb = []
    for wp, bp in padded_params:
        ki, ko = wp.shape
        # Constant index_map -> weights/biases fetched once, VMEM-resident across steps.
        in_specs.append(pl.BlockSpec((ki, ko), lambda i: (0, 0)))
        in_specs.append(pl.BlockSpec((1, ko), lambda i: (0, 0)))
        flat_wb.extend((wp, bp))

    out_specs = pl.BlockSpec((tile, out_pad), lambda i: (i, 0))

    # Cost hint for XLA's scheduler.
    flops = sum(2 * b_pad * wp.shape[0] * wp.shape[1] for wp, _ in padded_params)
    param_bytes = sum(wp.size * wp.dtype.itemsize + bp.size * bp.dtype.itemsize
                      for wp, bp in padded_params)
    io_itemsize = jnp.dtype(x.dtype).itemsize
    bytes_accessed = x_p.size * io_itemsize + param_bytes + b_pad * out_pad * io_itemsize
    cost = pl.CostEstimate(flops=flops,
                           transcendentals=b_pad * out_pad,   # tanh on output tile
                           bytes_accessed=bytes_accessed)

    # Explicit scoped-VMEM budget: double-buffered params + in/out tiles + working acts.
    max_feat = max(out_pad, max(wp.shape[1] for wp, _ in padded_params))
    vmem_limit = (2 * param_bytes                      # BlockSpec double-buffers operands
                  + 2 * 4 * tile * in_pad              # input activation tile (x2 buffers)
                  + 2 * 4 * tile * out_pad             # output tile (x2 buffers)
                  + 4 * 4 * tile * max_feat            # live intermediate activations
                  + (2 << 20))                         # headroom
    vmem_limit = int(min(max(vmem_limit, 32 << 20), 96 << 20))

    kernel = functools.partial(_fused_generator_kernel, n_layers=n_layers)
    out_p = pl.pallas_call(
        kernel,
        out_shape=jax.ShapeDtypeStruct((b_pad, out_pad), x.dtype),
        grid=grid,
        in_specs=in_specs,
        out_specs=out_specs,
        compiler_params=pltpu.CompilerParams(
            dimension_semantics=("parallel",),
            vmem_limit_bytes=vmem_limit),
        cost_estimate=cost,
    )(x_p, *flat_wb)

    return out_p[:B, :out_features]


def init_generator_params(key, input_size, hidden_sizes, output_size,
                          dtype=jnp.float32):
    """Deterministic synthetic parameters with the same shapes as the nn.Module."""
    sizes = [input_size] + list(hidden_sizes) + [output_size]
    params = []
    for fan_in, fan_out in zip(sizes[:-1], sizes[1:]):
        key, kw, kb = jax.random.split(key, 3)
        bound = 1.0 / jnp.sqrt(jnp.asarray(fan_in, dtype=jnp.float32))
        # stored as (in, out)  (PyTorch nn.Linear stores (out, in); we pre-transpose)
        w = jax.random.uniform(kw, (fan_in, fan_out), dtype=dtype,
                               minval=-bound, maxval=bound)
        b = jax.random.uniform(kb, (1, fan_out), dtype=dtype,
                               minval=-bound, maxval=bound)
        params.append((w, b))
    return params


def generator_reference(params, x):
    """Pure-JAX f32 reference for correctness check."""
    n = len(params)
    h = x
    for i, (w, b) in enumerate(params):
        y = h @ w + b
        if i == n - 1:
            h = jnp.tanh(y)
        else:
            h = jnp.where(y > 0, y, 0.2 * y)
    return h


if __name__ == "__main__":
    # Small shapes consistent with the module: noise vector in, sample vector out.
    batch = 8
    input_size = 32
    hidden_sizes = [64, 64]
    output_size = 32

    key = jax.random.PRNGKey(0)
    key, kx = jax.random.split(key)
    x = jax.random.normal(kx, (batch, input_size), dtype=jnp.float32)

    params = init_generator_params(key, input_size, hidden_sizes, output_size)
    # One-time padding + bf16 cast, OUTSIDE the per-call path.
    padded_params = prepare_generator_params(params, compute_dtype=jnp.bfloat16)

    fwd = jax.jit(generator_forward, static_argnames=("out_features",))
    out = jax.block_until_ready(fwd(padded_params, x, out_features=output_size))

    ref = generator_reference(params, x)
    assert out.shape == (batch, output_size)
    # bf16 MXU inputs with f32 accumulation: compare against the f32 reference with a
    # bf16-appropriate tolerance (tanh output is bounded in [-1, 1]).
    assert jnp.allclose(out, ref, atol=2e-2, rtol=2e-2), "mismatch vs JAX reference"

    print("KERNEL_OK")
</pallas_src>

<mosaic_0001>
module attributes {stable_mosaic.version = 11 : i64} {
  func.func @_fused_generator_kernel(%arg0: i32, %arg1: memref<8x128xf32, #tpu.memory_space<vmem>>, %arg2: memref<128x128xbf16, #tpu.memory_space<vmem>>, %arg3: memref<1x128xf32, #tpu.memory_space<vmem>>, %arg4: memref<128x128xbf16, #tpu.memory_space<vmem>>, %arg5: memref<1x128xf32, #tpu.memory_space<vmem>>, %arg6: memref<128x128xbf16, #tpu.memory_space<vmem>>, %arg7: memref<1x128xf32, #tpu.memory_space<vmem>>, %arg8: memref<8x128xf32, #tpu.memory_space<vmem>>) attributes {dimension_semantics = [#tpu.dimension_semantics<parallel>], iteration_bounds = array<i64: 1>, scalar_prefetch = 0 : i64, scratch_operands = 0 : i64, tpu.core_type = #tpu.core_type<tc>, window_params = [{transform_indices = @transform_0, window_bounds = array<i64: 8, 128>}, {pipeline_mode = #tpu.pipeline_mode<synchronous>, transform_indices = @transform_1, window_bounds = array<i64: 128, 128>}, {pipeline_mode = #tpu.pipeline_mode<synchronous>, transform_indices = @transform_2, window_bounds = array<i64: 1, 128>}, {pipeline_mode = #tpu.pipeline_mode<synchronous>, transform_indices = @transform_3, window_bounds = array<i64: 128, 128>}, {pipeline_mode = #tpu.pipeline_mode<synchronous>, transform_indices = @transform_4, window_bounds = array<i64: 1, 128>}, {pipeline_mode = #tpu.pipeline_mode<synchronous>, transform_indices = @transform_5, window_bounds = array<i64: 128, 128>}, {pipeline_mode = #tpu.pipeline_mode<synchronous>, transform_indices = @transform_6, window_bounds = array<i64: 1, 128>}, {transform_indices = @transform_7, window_bounds = array<i64: 8, 128>}]} {
    %c0 = arith.constant 0 : index
    %c0_0 = arith.constant 0 : index
    %0 = vector.load %arg1[%c0, %c0_0] : memref<8x128xf32, #tpu.memory_space<vmem>>, vector<8x128xf32>
    %c0_1 = arith.constant 0 : index
    %c0_2 = arith.constant 0 : index
    %1 = vector.load %arg2[%c0_1, %c0_2] : memref<128x128xbf16, #tpu.memory_space<vmem>>, vector<128x128xbf16>
    %c0_3 = arith.constant 0 : index
    %c0_4 = arith.constant 0 : index
    %2 = vector.load %arg3[%c0_3, %c0_4] : memref<1x128xf32, #tpu.memory_space<vmem>>, vector<1x128xf32>
    %3 = arith.truncf %0 : vector<8x128xf32> to vector<8x128xbf16>
    %cst = arith.constant dense<0.000000e+00> : vector<8x128xf32>
    %4 = tpu.matmul %3, %1, %cst {dimension_numbers = #tpu.dot_dimension_numbers<[1], [0], [0], [1], [0, 0, 1, 1], [], []>} : vector<8x128xbf16>, vector<128x128xbf16>, vector<8x128xf32> -> vector<8x128xf32>
    %5 = vector.broadcast %2 : vector<1x128xf32> to vector<8x128xf32>
    %6 = arith.addf %4, %5 : vector<8x128xf32>
    %cst_5 = arith.constant 2.000000e-01 : f32
    %7 = vector.broadcast %cst_5 : f32 to vector<8x128xf32>
    %8 = arith.mulf %7, %6 : vector<8x128xf32>
    %9 = arith.maximumf %6, %8 : vector<8x128xf32>
    %c0_6 = arith.constant 0 : index
    %c0_7 = arith.constant 0 : index
    %10 = vector.load %arg4[%c0_6, %c0_7] : memref<128x128xbf16, #tpu.memory_space<vmem>>, vector<128x128xbf16>
    %c0_8 = arith.constant 0 : index
    %c0_9 = arith.constant 0 : index
    %11 = vector.load %arg5[%c0_8, %c0_9] : memref<1x128xf32, #tpu.memory_space<vmem>>, vector<1x128xf32>
    %12 = arith.truncf %9 : vector<8x128xf32> to vector<8x128xbf16>
    %cst_10 = arith.constant dense<0.000000e+00> : vector<8x128xf32>
    %13 = tpu.matmul %12, %10, %cst_10 {dimension_numbers = #tpu.dot_dimension_numbers<[1], [0], [0], [1], [0, 0, 1, 1], [], []>} : vector<8x128xbf16>, vector<128x128xbf16>, vector<8x128xf32> -> vector<8x128xf32>
    %14 = vector.broadcast %11 : vector<1x128xf32> to vector<8x128xf32>
    %15 = arith.addf %13, %14 : vector<8x128xf32>
    %cst_11 = arith.constant 2.000000e-01 : f32
    %16 = vector.broadcast %cst_11 : f32 to vector<8x128xf32>
    %17 = arith.mulf %16, %15 : vector<8x128xf32>
    %18 = arith.maximumf %15, %17 : vector<8x128xf32>
    %c0_12 = arith.constant 0 : index
    %c0_13 = arith.constant 0 : index
    %19 = vector.load %arg6[%c0_12, %c0_13] : memref<128x128xbf16, #tpu.memory_space<vmem>>, vector<128x128xbf16>
    %c0_14 = arith.constant 0 : index
    %c0_15 = arith.constant 0 : index
    %20 = vector.load %arg7[%c0_14, %c0_15] : memref<1x128xf32, #tpu.memory_space<vmem>>, vector<1x128xf32>
    %21 = arith.truncf %18 : vector<8x128xf32> to vector<8x128xbf16>
    %cst_16 = arith.constant dense<0.000000e+00> : vector<8x128xf32>
    %22 = tpu.matmul %21, %19, %cst_16 {dimension_numbers = #tpu.dot_dimension_numbers<[1], [0], [0], [1], [0, 0, 1, 1], [], []>} : vector<8x128xbf16>, vector<128x128xbf16>, vector<8x128xf32> -> vector<8x128xf32>
    %23 = vector.broadcast %20 : vector<1x128xf32> to vector<8x128xf32>
    %24 = arith.addf %22, %23 : vector<8x128xf32>
    %25 = math.tanh %24 : vector<8x128xf32>
    %c0_17 = arith.constant 0 : index
    %c0_18 = arith.constant 0 : index
    %26 = vector.load %arg8[%c0_17, %c0_18] : memref<8x128xf32, #tpu.memory_space<vmem>>, vector<8x128xf32>
    tpu.vector_store %arg8[%c0_17, %c0_18], %25 {strides = array<i32>} : memref<8x128xf32, #tpu.memory_space<vmem>>, vector<8x128xf32>,
    return
  }
  func.func @transform_0(%arg0: i32) -> (i32, i32) {
    %c0_i32 = arith.constant 0 : i32
    %c0_i32_0 = arith.constant 0 : i32
    return %arg0, %c0_i32 : i32, i32
  }
  func.func @transform_1(%arg0: i32) -> (i32, i32) {
    %c0_i32 = arith.constant 0 : i32
    %c0_i32_0 = arith.constant 0 : i32
    %c0_i32_1 = arith.constant 0 : i32
    return %c0_i32, %c0_i32_0 : i32, i32
  }
  func.func @transform_2(%arg0: i32) -> (i32, i32) {
    %c0_i32 = arith.constant 0 : i32
    %c0_i32_0 = arith.constant 0 : i32
    %c0_i32_1 = arith.constant 0 : i32
    return %c0_i32, %c0_i32_0 : i32, i32
  }
  func.func @transform_3(%arg0: i32) -> (i32, i32) {
    %c0_i32 = arith.constant 0 : i32
    %c0_i32_0 = arith.constant 0 : i32
    %c0_i32_1 = arith.constant 0 : i32
    return %c0_i32, %c0_i32_0 : i32, i32
  }
  func.func @transform_4(%arg0: i32) -> (i32, i32) {
    %c0_i32 = arith.constant 0 : i32
    %c0_i32_0 = arith.constant 0 : i32
    %c0_i32_1 = arith.constant 0 : i32
    return %c0_i32, %c0_i32_0 : i32, i32
  }
  func.func @transform_5(%arg0: i32) -> (i32, i32) {
    %c0_i32 = arith.constant 0 : i32
    %c0_i32_0 = arith.constant 0 : i32
    %c0_i32_1 = arith.constant 0 : i32
    return %c0_i32, %c0_i32_0 : i32, i32
  }
  func.func @transform_6(%arg0: i32) -> (i32, i32) {
    %c0_i32 = arith.constant 0 : i32
    %c0_i32_0 = arith.constant 0 : i32
    %c0_i32_1 = arith.constant 0 : i32
    return %c0_i32, %c0_i32_0 : i32, i32
  }
  func.func @transform_7(%arg0: i32) -> (i32, i32) {
    %c0_i32 = arith.constant 0 : i32
    %c0_i32_0 = arith.constant 0 : i32
    return %arg0, %c0_i32 : i32, i32
  }
}

</mosaic_0001>

<llo_original>
// kernel: generator_forward.1
$region0: #{generator_forward.1}
  #allocation0 [shape = 'u32[]', space=smem, size = 0x4, offset = 0x4, fixed_abs, tag = 'smem constant byte address 0x4 - core index']
  #allocation1 [shape = 'u32[144,128]{1,0:T(1,128)}', space=vmem, size = 0x12000, scoped, tag = 'internal scratch']
  %s0 = inlined_call_operand.vmem [shape: f32[8,128], index: 0, kind: input, shape index: {}]
  %s1 = inlined_call_operand.hbm [shape: bf16[128,128], index: 1, kind: input, shape index: {}]
  %s2 = inlined_call_operand.vmem [shape: f32[1,128], index: 2, kind: input, shape index: {}]
  %s3 = inlined_call_operand.hbm [shape: bf16[128,128], index: 3, kind: input, shape index: {}]
  %s4 = inlined_call_operand.vmem [shape: f32[1,128], index: 4, kind: input, shape index: {}]
  %s5 = inlined_call_operand.hbm [shape: bf16[128,128], index: 5, kind: input, shape index: {}]
  %s6 = inlined_call_operand.vmem [shape: f32[1,128], index: 6, kind: input, shape index: {}]
  %s7 = inlined_call_operand.hbm [shape: f32[8,128], index: 7, kind: output, shape index: {}]
  %s8 = sld [smem:[#allocation0]]
  $region50: #{generator_forward.1} parent=0
    _
  %s10 = ssub.s32 1, %s8
  %s11 = scalar_select 0, %s10, %s8
  $region1: #{generator_forward.1} parent=0
    #allocation2 [shape = 'u8[32768]{0}', space=vmem, size = 0x8000, scoped, tag = 'input window, operand 1, single buffered']
    #allocation3 [shape = 's32[1]{0}', space=sflag, size = 0x4, scoped, tag = 'scoped memory for generator_forward.1']
    #allocation4 [shape = 's32[1]{0}', space=sflag, size = 0x4, scoped, tag = 'scoped memory for generator_forward.1']
    #allocation5 [shape = 'u8[32768]{0}', space=vmem, size = 0x8000, scoped, tag = 'input window, operand 3, single buffered']
    #allocation6 [shape = 's32[1]{0}', space=sflag, size = 0x4, scoped, tag = 'scoped memory for generator_forward.1']
    #allocation7 [shape = 'u8[32768]{0}', space=vmem, size = 0x8000, scoped, tag = 'input window, operand 5, single buffered']
    #allocation8 [shape = 'u8[4096]{0}', space=vmem, size = 0x1000, scoped, tag = 'output window, operand 0, single buffered']
    %12 = vsyncpa [#allocation3], 0
    %13 = vsyncpa [#allocation6], 0
    %14 = vsyncpa [#allocation4], 0
    // Predicated region
    $region2: #{generator_forward.1} parent=1 // pred_check
      _
    $region3: #{generator_forward.1} parent=1 // pred_check_branch
      %16 = sbr.rel (0) target = $region5
    $region4: #{generator_forward.1} parent=1 // pred_region
      _
    $region5: #{generator_forward.1} parent=1 // pred_fallthru
      _
    // Predicated region
    $region6: #{generator_forward.1} parent=1 // pred_check
      _
    $region7: #{generator_forward.1} parent=1 // pred_check_branch
      %18 = sbr.rel (0) target = $region9
    $region8: #{generator_forward.1} parent=1 // pred_region
      %s20 = ssub.s32 1024, 1024
      %21 = vsyncadd [#allocation3], %s20
      %s22 = sshll.u32 [#allocation2], 4
      %s23 = int_to_ptr.vmem [resolvable:$true] %s22
      %28 = dma.hbm_to_vmem [thread:$0]  %s1, 1024, %s23, [#allocation3], 64, 64, 4
    $region9: #{generator_forward.1} parent=1 // pred_fallthru
      _
    // Predicated region
    $region10: #{generator_forward.1} parent=1 // pred_check
      _
    $region11: #{generator_forward.1} parent=1 // pred_check_branch
      %30 = sbr.rel (0) target = $region13
    $region12: #{generator_forward.1} parent=1 // pred_region
      _
    $region13: #{generator_forward.1} parent=1 // pred_fallthru
      _
    // Predicated region
    $region14: #{generator_forward.1} parent=1 // pred_check
      _
    $region15: #{generator_forward.1} parent=1 // pred_check_branch
      %32 = sbr.rel (0) target = $region17
    $region16: #{generator_forward.1} parent=1 // pred_region
      %s34 = ssub.s32 1024, 1024
      %35 = vsyncadd [#allocation6], %s34
      %s36 = sshll.u32 [#allocation5], 4
      %s37 = int_to_ptr.vmem [resolvable:$true] %s36
      %42 = dma.hbm_to_vmem [thread:$0]  %s3, 1024, %s37, [#allocation6], 64, 64, 4
    $region17: #{generator_forward.1} parent=1 // pred_fallthru
      _
    // Predicated region
    $region18: #{generator_forward.1} parent=1 // pred_check
      _
    $region19: #{generator_forward.1} parent=1 // pred_check_branch
      %44 = sbr.rel (0) target = $region21
    $region20: #{generator_forward.1} parent=1 // pred_region
      _
    $region21: #{generator_forward.1} parent=1 // pred_fallthru
      _
    // Predicated region
    $region22: #{generator_forward.1} parent=1 // pred_check
      _
    $region23: #{generator_forward.1} parent=1 // pred_check_branch
      %46 = sbr.rel (0) target = $region25
    $region24: #{generator_forward.1} parent=1 // pred_region
      %s48 = ssub.s32 1024, 1024
      %49 = vsyncadd [#allocation6], %s48
      %s50 = sshll.u32 [#allocation7], 4
      %s51 = int_to_ptr.vmem [resolvable:$true] %s50
      %56 = dma.hbm_to_vmem [thread:$0]  %s5, 1024, %s51, [#allocation6], 64, 64, 4
    $region25: #{generator_forward.1} parent=1 // pred_fallthru
      _
    // Predicated region
    $region26: #{generator_forward.1} parent=1 // pred_check
      _
    $region27: #{generator_forward.1} parent=1 // pred_check_branch
      %58 = sbr.rel (0) target = $region29
    $region28: #{generator_forward.1} parent=1 // pred_region
      _
    $region29: #{generator_forward.1} parent=1 // pred_fallthru
      _
    // Predicated region
    $region30: #{generator_forward.1} parent=1 // pred_check
      _
    $region31: #{generator_forward.1} parent=1 // pred_check_branch
      %60 = sbr.rel (0) target = $region33
    $region32: #{generator_forward.1} parent=1 // pred_region
      %61 = dma.done [#allocation3], 1024
    $region33: #{generator_forward.1} parent=1 // pred_fallthru
      _
    // Predicated region
    $region34: #{generator_forward.1} parent=1 // pred_check
      _
    $region35: #{generator_forward.1} parent=1 // pred_check_branch
      %63 = sbr.rel (0) target = $region37
    $region36: #{generator_forward.1} parent=1 // pred_region
      %64 = dma.done [#allocation6], 1024
    $region37: #{generator_forward.1} parent=1 // pred_fallthru
      _
    // Predicated region
    $region38: #{generator_forward.1} parent=1 // pred_check
      _
    $region39: #{generator_forward.1} parent=1 // pred_check_branch
      %66 = sbr.rel (0) target = $region41
    $region40: #{generator_forward.1} parent=1 // pred_region
      %67 = dma.done [#allocation6], 1024
    $region41: #{generator_forward.1} parent=1 // pred_fallthru
      _
    %v69 = vld [vmem:[%s0] sm:$0xff]
    %v70 = vld [vmem:[#allocation2] sm:$0xf]
    %v71 = vld [vmem:[#allocation2 + $0x4] sm:$0xf]
    %v72 = vld [vmem:[#allocation2 + $0x8] sm:$0xf]
    %v73 = vld [vmem:[#allocation2 + $0xc] sm:$0xf]
    %v74 = vld [vmem:[#allocation2 + $0x10] sm:$0xf]
    %v75 = vld [vmem:[#allocation2 + $0x14] sm:$0xf]
    %v76 = vld [vmem:[#allocation2 + $0x18] sm:$0xf]
    %v77 = vld [vmem:[#allocation2 + $0x1c] sm:$0xf]
    %v78 = vld [vmem:[#allocation2 + $0x20] sm:$0xf]
    %v79 = vld [vmem:[#allocation2 + $0x24] sm:$0xf]
    %v80 = vld [vmem:[#allocation2 + $0x28] sm:$0xf]
    %v81 = vld [vmem:[#allocation2 + $0x2c] sm:$0xf]
    %v82 = vld [vmem:[#allocation2 + $0x30] sm:$0xf]
    %v83 = vld [vmem:[#allocation2 + $0x34] sm:$0xf]
    %v84 = vld [vmem:[#allocation2 + $0x38] sm:$0xf]
    %v85 = vld [vmem:[#allocation2 + $0x3c] sm:$0xf]
    %v86 = vld [vmem:[%s2] sm:$0x1]
    %v87 = vpack.c.bf16 %v69, %v69
    %v89 = vlaneseq
    %v90 = vshrl.u32 %v89, 7
    %v91 = vsub.s32 0, %v90
    %v92 = vrot.slane %v86, %v91
    %v110 = vunpack.c.l.b16 %v70
    %v111 = vunpack.c.l.b16 %v71
    %v112 = vunpack.c.l.b16 %v72
    %v113 = vunpack.c.l.b16 %v73
    %v114 = vunpack.c.l.b16 %v74
    %v115 = vunpack.c.l.b16 %v75
    %v116 = vunpack.c.l.b16 %v76
    %v117 = vunpack.c.l.b16 %v77
    %v118 = vunpack.c.l.b16 %v78
    %v119 = vunpack.c.l.b16 %v79
    %v120 = vunpack.c.l.b16 %v80
    %v121 = vunpack.c.l.b16 %v81
    %v122 = vunpack.c.l.b16 %v82
    %v123 = vunpack.c.l.b16 %v83
    %v124 = vunpack.c.l.b16 %v84
    %v125 = vunpack.c.l.b16 %v85
    %v126 = vpack.c.b16 %v111, %v110
    %v127 = vpack.c.b16 %v113, %v112
    %v128 = vpack.c.b16 %v115, %v114
    %v129 = vpack.c.b16 %v117, %v116
    %v130 = vpack.c.b16 %v119, %v118
    %v131 = vpack.c.b16 %v121, %v120
    %v132 = vpack.c.b16 %v123, %v122
    %v133 = vpack.c.b16 %v125, %v124
    %142 = vmatprep.subr.bf16.mxu0 0
    %143 = vmatpush1.bf16.msra.mxu0 %v126
    %144 = vmatprep.subr.bf16.mxu0 0
    %145 = vmatpush1.bf16.msra.mxu0 %v127
    %146 = vmatprep.subr.bf16.mxu0 0
    %147 = vmatpush1.bf16.msra.mxu0 %v128
    %148 = vmatprep.subr.bf16.mxu0 0
    %149 = vmatpush1.bf16.msra.mxu0 %v129
    %150 = vmatprep.subr.bf16.mxu0 0
    %151 = vmatpush1.bf16.msra.mxu0 %v130
    %152 = vmatprep.subr.bf16.mxu0 0
    %153 = vmatpush1.bf16.msra.mxu0 %v131
    %154 = vmatprep.subr.bf16.mxu0 0
    %155 = vmatpush1.bf16.msra.mxu0 %v132
    %156 = vmatprep.subr.bf16.mxu0 0
    %157 = vmatpush1.bf16.msra.mxu0 %v133
    %158 = vmatprep.subr.bf16.mxu0 0
    %159 = vmatpush1.bf16.msra.mxu0 0
    %160 = vmatprep.subr.bf16.mxu0 0
    %161 = vmatpush1.bf16.msra.mxu0 0
    %162 = vmatprep.subr.bf16.mxu0 0
    %163 = vmatpush1.bf16.msra.mxu0 0
    %164 = vmatprep.subr.bf16.mxu0 0
    %165 = vmatpush1.bf16.msra.mxu0 0
    %166 = vmatprep.subr.bf16.mxu0 0
    %167 = vmatpush1.bf16.msra.mxu0 0
    %168 = vmatprep.subr.bf16.mxu0 0
    %169 = vmatpush1.bf16.msra.mxu0 0
    %170 = vmatprep.subr.bf16.mxu0 0
    %171 = vmatpush1.bf16.msra.mxu0 0
    %172 = vmatprep.subr.bf16.mxu0 0
    %173 = vmatpush1.bf16.msra.mxu0 0
    %174 = vmatprep.mubr.bf16.mxu0 0
    %175 = vmatmul.mubr.bf16.gmra.mrb[0].mxu0 %v87
    %v176 = vpop.f32.mrb[0].mxu0
    %v177 = vadd.f32 %v92, %v176
    %v178 = vpop.f32.mrb[0].mxu0
    %v179 = vpop.f32.mrb[0].mxu0
    %v180 = vpop.f32.mrb[0].mxu0
    %181 = vdwg.mxu0
    %v182 = vmul.f32 %v177, 0.2
    %v183 = vmax.f32 %v177, %v182
    %v184 = vld [vmem:[#allocation5] sm:$0xf]
    %v185 = vld [vmem:[#allocation5 + $0x4] sm:$0xf]
    %v186 = vld [vmem:[#allocation5 + $0x8] sm:$0xf]
    %v187 = vld [vmem:[#allocation5 + $0xc] sm:$0xf]
    %v188 = vld [vmem:[#allocation5 + $0x10] sm:$0xf]
    %v189 = vld [vmem:[#allocation5 + $0x14] sm:$0xf]
    %v190 = vld [vmem:[#allocation5 + $0x18] sm:$0xf]
    %v191 = vld [vmem:[#allocation5 + $0x1c] sm:$0xf]
    %v192 = vld [vmem:[#allocation5 + $0x20] sm:$0xf]
    %v193 = vld [vmem:[#allocation5 + $0x24] sm:$0xf]
    %v194 = vld [vmem:[#allocation5 + $0x28] sm:$0xf]
    %v195 = vld [vmem:[#allocation5 + $0x2c] sm:$0xf]
    %v196 = vld [vmem:[#allocation5 + $0x30] sm:$0xf]
    %v197 = vld [vmem:[#allocation5 + $0x34] sm:$0xf]
    %v198 = vld [vmem:[#allocation5 + $0x38] sm:$0xf]
    %v199 = vld [vmem:[#allocation5 + $0x3c] sm:$0xf]
    %v200 = vld [vmem:[%s4] sm:$0x1]
    %v201 = vpack.c.bf16 %v183, %v183
    %v203 = vlaneseq
    %v204 = vshrl.u32 %v203, 7
    %v205 = vsub.s32 0, %v204
    %v206 = vrot.slane %v200, %v205
    %v224 = vunpack.c.l.b16 %v184
    %v225 = vunpack.c.l.b16 %v185
    %v226 = vunpack.c.l.b16 %v186
    %v227 = vunpack.c.l.b16 %v187
    %v228 = vunpack.c.l.b16 %v188
    %v229 = vunpack.c.l.b16 %v189
    %v230 = vunpack.c.l.b16 %v190
    %v231 = vunpack.c.l.b16 %v191
    %v232 = vunpack.c.l.b16 %v192
    %v233 = vunpack.c.l.b16 %v193
    %v234 = vunpack.c.l.b16 %v194
    %v235 = vunpack.c.l.b16 %v195
    %v236 = vunpack.c.l.b16 %v196
    %v237 = vunpack.c.l.b16 %v197
    %v238 = vunpack.c.l.b16 %v198
    %v239 = vunpack.c.l.b16 %v199
    %v240 = vpack.c.b16 %v225, %v224
    %v241 = vpack.c.b16 %v227, %v226
    %v242 = vpack.c.b16 %v229, %v228
    %v243 = vpack.c.b16 %v231, %v230
    %v244 = vpack.c.b16 %v233, %v232
    %v245 = vpack.c.b16 %v235, %v234
    %v246 = vpack.c.b16 %v237, %v236
    %v247 = vpack.c.b16 %v239, %v238
    %256 = vmatprep.subr.bf16.mxu0 0
    %257 = vmatpush1.bf16.msra.mxu0 %v240
    %258 = vmatprep.subr.bf16.mxu0 0
    %259 = vmatpush1.bf16.msra.mxu0 %v241
    %260 = vmatprep.subr.bf16.mxu0 0
    %261 = vmatpush1.bf16.msra.mxu0 %v242
    %262 = vmatprep.subr.bf16.mxu0 0
    %263 = vmatpush1.bf16.msra.mxu0 %v243
    %264 = vmatprep.subr.bf16.mxu0 0
    %265 = vmatpush1.bf16.msra.mxu0 %v244
    %266 = vmatprep.subr.bf16.mxu0 0
    %267 = vmatpush1.bf16.msra.mxu0 %v245
    %268 = vmatprep.subr.bf16.mxu0 0
    %269 = vmatpush1.bf16.msra.mxu0 %v246
    %270 = vmatprep.subr.bf16.mxu0 0
    %271 = vmatpush1.bf16.msra.mxu0 %v247
    %272 = vmatprep.subr.bf16.mxu0 0
    %273 = vmatpush1.bf16.msra.mxu0 0
    %274 = vmatprep.subr.bf16.mxu0 0
    %275 = vmatpush1.bf16.msra.mxu0 0
    %276 = vmatprep.subr.bf16.mxu0 0
    %277 = vmatpush1.bf16.msra.mxu0 0
    %278 = vmatprep.subr.bf16.mxu0 0
    %279 = vmatpush1.bf16.msra.mxu0 0
    %280 = vmatprep.subr.bf16.mxu0 0
    %281 = vmatpush1.bf16.msra.mxu0 0
    %282 = vmatprep.subr.bf16.mxu0 0
    %283 = vmatpush1.bf16.msra.mxu0 0
    %284 = vmatprep.subr.bf16.mxu0 0
    %285 = vmatpush1.bf16.msra.mxu0 0
    %286 = vmatprep.subr.bf16.mxu0 0
    %287 = vmatpush1.bf16.msra.mxu0 0
    %288 = vmatprep.mubr.bf16.mxu0 0
    %289 = vmatmul.mubr.bf16.gmra.mrb[0].mxu0 %v201
    %v290 = vpop.f32.mrb[0].mxu0
    %v291 = vadd.f32 %v206, %v290
    %v292 = vpop.f32.mrb[0].mxu0
    %v293 = vpop.f32.mrb[0].mxu0
    %v294 = vpop.f32.mrb[0].mxu0
    %295 = vdwg.mxu0
    %v296 = vmul.f32 %v291, 0.2
    %v297 = vmax.f32 %v291, %v296
    %v298 = vld [vmem:[#allocation7] sm:$0xf]
    %v299 = vld [vmem:[#allocation7 + $0x4] sm:$0xf]
    %v300 = vld [vmem:[#allocation7 + $0x8] sm:$0xf]
    %v301 = vld [vmem:[#allocation7 + $0xc] sm:$0xf]
    %v302 = vld [vmem:[#allocation7 + $0x10] sm:$0xf]
    %v303 = vld [vmem:[#allocation7 + $0x14] sm:$0xf]
    %v304 = vld [vmem:[#allocation7 + $0x18] sm:$0xf]
    %v305 = vld [vmem:[#allocation7 + $0x1c] sm:$0xf]
    %v306 = vld [vmem:[#allocation7 + $0x20] sm:$0xf]
    %v307 = vld [vmem:[#allocation7 + $0x24] sm:$0xf]
    %v308 = vld [vmem:[#allocation7 + $0x28] sm:$0xf]
    %v309 = vld [vmem:[#allocation7 + $0x2c] sm:$0xf]
    %v310 = vld [vmem:[#allocation7 + $0x30] sm:$0xf]
    %v311 = vld [vmem:[#allocation7 + $0x34] sm:$0xf]
    %v312 = vld [vmem:[#allocation7 + $0x38] sm:$0xf]
    %v313 = vld [vmem:[#allocation7 + $0x3c] sm:$0xf]
    %v314 = vld [vmem:[%s6] sm:$0x1]
    %v315 = vpack.c.bf16 %v297, %v297
    %v317 = vlaneseq
    %v318 = vshrl.u32 %v317, 7
    %v319 = vsub.s32 0, %v318
    %v320 = vrot.slane %v314, %v319
    %v338 = vunpack.c.l.b16 %v298
    %v339 = vunpack.c.l.b16 %v299
    %v340 = vunpack.c.l.b16 %v300
    %v341 = vunpack.c.l.b16 %v301
    %v342 = vunpack.c.l.b16 %v302
    %v343 = vunpack.c.l.b16 %v303
    %v344 = vunpack.c.l.b16 %v304
    %v345 = vunpack.c.l.b16 %v305
    %v346 = vunpack.c.l.b16 %v306
    %v347 = vunpack.c.l.b16 %v307
    %v348 = vunpack.c.l.b16 %v308
    %v349 = vunpack.c.l.b16 %v309
    %v350 = vunpack.c.l.b16 %v310
    %v351 = vunpack.c.l.b16 %v311
    %v352 = vunpack.c.l.b16 %v312
    %v353 = vunpack.c.l.b16 %v313
    %v354 = vpack.c.b16 %v339, %v338
    %v355 = vpack.c.b16 %v341, %v340
    %v356 = vpack.c.b16 %v343, %v342
    %v357 = vpack.c.b16 %v345, %v344
    %v358 = vpack.c.b16 %v347, %v346
    %v359 = vpack.c.b16 %v349, %v348
    %v360 = vpack.c.b16 %v351, %v350
    %v361 = vpack.c.b16 %v353, %v352
    %370 = vmatprep.subr.bf16.mxu0 0
    %371 = vmatpush1.bf16.msra.mxu0 %v354
    %372 = vmatprep.subr.bf16.mxu0 0
    %373 = vmatpush1.bf16.msra.mxu0 %v355
    %374 = vmatprep.subr.bf16.mxu0 0
    %375 = vmatpush1.bf16.msra.mxu0 %v356
    %376 = vmatprep.subr.bf16.mxu0 0
    %377 = vmatpush1.bf16.msra.mxu0 %v357
    %378 = vmatprep.subr.bf16.mxu0 0
    %379 = vmatpush1.bf16.msra.mxu0 %v358
    %380 = vmatprep.subr.bf16.mxu0 0
    %381 = vmatpush1.bf16.msra.mxu0 %v359
    %382 = vmatprep.subr.bf16.mxu0 0
    %383 = vmatpush1.bf16.msra.mxu0 %v360
    %384 = vmatprep.subr.bf16.mxu0 0
    %385 = vmatpush1.bf16.msra.mxu0 %v361
    %386 = vmatprep.subr.bf16.mxu0 0
    %387 = vmatpush1.bf16.msra.mxu0 0
    %388 = vmatprep.subr.bf16.mxu0 0
    %389 = vmatpush1.bf16.msra.mxu0 0
    %390 = vmatprep.subr.bf16.mxu0 0
    %391 = vmatpush1.bf16.msra.mxu0 0
    %392 = vmatprep.subr.bf16.mxu0 0
    %393 = vmatpush1.bf16.msra.mxu0 0
    %394 = vmatprep.subr.bf16.mxu0 0
    %395 = vmatpush1.bf16.msra.mxu0 0
    %396 = vmatprep.subr.bf16.mxu0 0
    %397 = vmatpush1.bf16.msra.mxu0 0
    %398 = vmatprep.subr.bf16.mxu0 0
    %399 = vmatpush1.bf16.msra.mxu0 0
    %400 = vmatprep.subr.bf16.mxu0 0
    %401 = vmatpush1.bf16.msra.mxu0 0
    %402 = vmatprep.mubr.bf16.mxu0 0
    %403 = vmatmul.mubr.bf16.gmra.mrb[0].mxu0 %v315
    %v404 = vpop.f32.mrb[0].mxu0
    %v405 = vadd.f32 %v320, %v404
    %v406 = vpop.f32.mrb[0].mxu0
    %v407 = vpop.f32.mrb[0].mxu0
    %v408 = vpop.f32.mrb[0].mxu0
    %409 = vdwg.mxu0
    %v410 = vtanh.pop %v405
    %411 = vst [vmem:[#allocation8] sm:$0xff] %v410
    // Predicated region
    $region42: #{generator_forward.1} parent=1 // pred_check
      _
    $region43: #{generator_forward.1} parent=1 // pred_check_branch
      %413 = sbr.rel (0) target = $region45
    $region44: #{generator_forward.1} parent=1 // pred_region
      %s415 = ssub.s32 128, 128
      %416 = vsyncadd [#allocation4], %s415
      %s418 = sshll.u32 [#allocation8], 4
      %s419 = int_to_ptr.vmem [resolvable:$true] %s418
      %421 = dma.vmem_to_hbm [thread:$0]  %s419, 128, %s7, [#allocation4]
    $region45: #{generator_forward.1} parent=1 // pred_fallthru
      _
    // Predicated region
    $region46: #{generator_forward.1} parent=1 // pred_check
      _
    $region47: #{generator_forward.1} parent=1 // pred_check_branch
      %423 = sbr.rel (0) target = $region49
    $region48: #{generator_forward.1} parent=1 // pred_region
      %424 = dma.done [#allocation4], 128
    $region49: #{generator_forward.1} parent=1 // pred_fallthru
      _
    %425 = vsyncpa [#allocation3], 1
    %426 = vsyncpa [#allocation6], 1
    %427 = vsyncpa [#allocation4], 1

</llo_original>
